<compile_context>
chip_gen: v7x
topology: tpu7x:2x2x1
jax: 0.10.0
libtpu: 0.0.40
codegen_flags: <defaults>
</compile_context>

<pallas_src>
import jax
import jax.numpy as jnp
from jax.experimental import pallas as pl
from jax.experimental.pallas import tpu as pltpu


# ----------------------------- kernels --------------------------------------


def _mlp_resident_kernel(x_ref, w1_ref, b1_ref, w2_ref, b2_ref, w3_ref, b3_ref, o_ref):
    """All three weights VMEM-resident; one batch tile per grid step (fully fused MLP)."""
    x = x_ref[...]
    h1 = jnp.dot(x, w1_ref[...], preferred_element_type=jnp.float32) + b1_ref[...]
    h1 = jnp.maximum(h1, 0.0)
    h2 = jnp.dot(h1.astype(w2_ref.dtype), w2_ref[...],
                 preferred_element_type=jnp.float32) + b2_ref[...]
    h2 = jnp.maximum(h2, 0.0)
    out = jnp.dot(h2.astype(w3_ref.dtype), w3_ref[...],
                  preferred_element_type=jnp.float32) + b3_ref[...]
    o_ref[...] = out.astype(o_ref.dtype)


def _mlp_streaming_kernel(x_ref, w1_ref, b1_ref, w2_ref, b2_ref, w3_ref, b3_ref, o_ref, acc_ref):
    """Hidden-dim-chunked variant for weight sets that do not fit VMEM (e.g. large H on v7x).

    Grid = (batch_tiles, hidden_chunks).  Per chunk j: h1_j = relu(x @ w1[:, j] + b1[j]) and the
    layer-2 pre-activation accumulates acc += h1_j @ w2[j, :] in an f32 scratch.  On the last
    chunk the epilogue applies bias+ReLU and the resident layer-3 matmul, then stores the tile.
    """
    j = pl.program_id(1)

    @pl.when(j == 0)
    def _():
        acc_ref[...] = jnp.zeros_like(acc_ref)

    x = x_ref[...]
    h1 = jnp.dot(x, w1_ref[...], preferred_element_type=jnp.float32) + b1_ref[...]
    h1 = jnp.maximum(h1, 0.0)
    acc_ref[...] += jnp.dot(h1.astype(w2_ref.dtype), w2_ref[...],
                            preferred_element_type=jnp.float32)

    @pl.when(j == pl.num_programs(1) - 1)
    def _():
        h2 = jnp.maximum(acc_ref[...] + b2_ref[...], 0.0)
        out = jnp.dot(h2.astype(w3_ref.dtype), w3_ref[...],
                      preferred_element_type=jnp.float32) + b3_ref[...]
        o_ref[...] = out.astype(o_ref.dtype)


# ----------------------------- helpers --------------------------------------


def _round_up(n: int, m: int) -> int:
    return ((n + m - 1) // m) * m


def _pad_axis(a, axis: int, target: int):
    pad = target - a.shape[axis]
    if pad <= 0:
        return a
    widths = [(0, 0)] * a.ndim
    widths[axis] = (0, pad)
    return jnp.pad(a, widths)


def _device_kind() -> str:
    try:
        return jax.devices()[0].device_kind.lower()
    except Exception:
        return ""


def _vmem_budget_bytes() -> int:
    """Usable per-core VMEM (generation-aware), with headroom for Mosaic internals."""
    try:
        cap = int(pltpu.get_tpu_info().vmem_capacity_bytes)
    except Exception:
        cap = 64 * 2**20  # conservative default (v7x per-TC VMEM)
    return max(32 * 2**20, int(cap * 0.85))


def _spec(shape, index_map, buffers=None):
    """BlockSpec with optional explicit buffer count (1 = single-buffer block-invariant inputs)."""
    if buffers is None:
        return pl.BlockSpec(shape, index_map)
    try:
        return pl.BlockSpec(shape, index_map, pipeline_mode=pl.Buffered(buffers))
    except (TypeError, AttributeError):  # older jax without pipeline_mode / Buffered
        return pl.BlockSpec(shape, index_map)


def _padded_dims(K: int, H: int, O: int):
    """Lane-dense padded feature dims; 256-align hidden only on v6e/v7x and only when H is large."""
    is_v5 = "v5" in _device_kind()
    h_align = 256 if (not is_v5 and H > 256) else 128
    return _round_up(K, 128), _round_up(H, h_align), _round_up(O, 128)


def _padding_inflation(B: int, K: int, H: int, O: int) -> float:
    K_pad, H_pad, O_pad = _padded_dims(K, H, O)
    B_pad = _round_up(B, 16)
    logical = max(B * (K * H + H * H + H * O), 1)
    padded = B_pad * (K_pad * H_pad + H_pad * H_pad + H_pad * O_pad)
    return padded / logical


def _tm_candidates(b_pad: int, block_m: int):
    """Batch-tile sizes (multiples of 16 dividing b_pad), largest first; >=2 tiles when possible."""
    cap = min(block_m, b_pad)
    if b_pad >= 32:
        cap = min(cap, b_pad // 2)  # keep both v7x TensorCores busy on the "parallel" axis
    cap = max(16, (cap // 16) * 16)
    cands = [t for t in range(cap, 15, -16) if b_pad % t == 0]
    return cands or [16]


def _choose_th(H_pad, budget, tm, K_pad, O_pad, w_isz, out_isz):
    """Largest hidden-chunk size (multiple of 128 dividing H_pad) whose streaming footprint fits."""
    for t in range(H_pad, 0, -128):
        if H_pad % t != 0:
            continue
        est = (
            2 * tm * K_pad * w_isz                 # x tile (double-buffered)
            + 2 * (K_pad * t + t * H_pad) * w_isz  # w1 column-chunk + w2 row-chunk (double-buffered)
            + H_pad * O_pad * w_isz                # resident w3
            + (2 * t + H_pad + O_pad) * 4          # biases (f32)
            + tm * H_pad * 4                       # f32 accumulator scratch
            + 2 * tm * O_pad * out_isz             # output tile
            + tm * t * 4 + tm * O_pad * 4          # f32 temporaries
        )
        if est <= budget:
            return t
    return None


def _xla_forward_raw(x, params, compute_dtype):
    cd = jnp.dtype(compute_dtype)
    f32 = jnp.float32
    h1 = jnp.maximum(jnp.dot(x.astype(cd), params["w1"].astype(cd),
                             preferred_element_type=f32) + params["b1"].astype(f32), 0.0)
    h2 = jnp.maximum(jnp.dot(h1.astype(cd), params["w2"].astype(cd),
                             preferred_element_type=f32) + params["b2"].astype(f32), 0.0)
    out = jnp.dot(h2.astype(cd), params["w3"].astype(cd),
                  preferred_element_type=f32) + params["b3"].astype(f32)
    return out.astype(x.dtype)


def _xla_forward_prepared(x, p):
    _, _, O, K_pad, _, _ = p["dims"]
    cd = p["compute_dtype"]
    xk = _pad_axis(x, 1, K_pad).astype(cd)
    h1 = jnp.maximum(jnp.dot(xk, p["w1"], preferred_element_type=jnp.float32) + p["b1"], 0.0)
    h2 = jnp.maximum(jnp.dot(h1.astype(cd), p["w2"], preferred_element_type=jnp.float32) + p["b2"], 0.0)
    out = jnp.dot(h2.astype(cd), p["w3"], preferred_element_type=jnp.float32) + p["b3"]
    return out[:, :O].astype(x.dtype)


# ----------------------------- public API -----------------------------------


def prepare_params(params, *, compute_dtype=jnp.float32):
    """Pad + cast the weights ONCE (hoisted out of the per-call path).

    Zero padding is exact through Linear+ReLU (padded inputs/hidden units contribute 0,
    padded outputs are sliced off).  Biases stay f32 for an exact epilogue.
    """
    w1, b1, w2, b2, w3, b3 = (params[k] for k in ("w1", "b1", "w2", "b2", "w3", "b3"))
    K, H = w1.shape
    O = w3.shape[1]
    K_pad, H_pad, O_pad = _padded_dims(K, H, O)
    cd = jnp.dtype(compute_dtype)
    return dict(
        _prepared=True,
        w1=_pad_axis(_pad_axis(w1, 0, K_pad), 1, H_pad).astype(cd),
        w2=_pad_axis(_pad_axis(w2, 0, H_pad), 1, H_pad).astype(cd),
        w3=_pad_axis(_pad_axis(w3, 0, H_pad), 1, O_pad).astype(cd),
        b1=_pad_axis(b1, 1, H_pad).astype(jnp.float32),
        b2=_pad_axis(b2, 1, H_pad).astype(jnp.float32),
        b3=_pad_axis(b3, 1, O_pad).astype(jnp.float32),
        dims=(K, H, O, K_pad, H_pad, O_pad),
        compute_dtype=cd,
    )


def feedforward_nn(x, params, *, block_m: int = 512, compute_dtype=jnp.float32,
                   allow_xla_fallback: bool = True, force_streaming: bool = False,
                   hidden_chunk: int | None = None):
    """x: [B, input_shape]; params: raw dict (w1,b1,...) or the output of prepare_params()."""
    is_prepared = isinstance(params, dict) and bool(params.get("_prepared", False))
    if not is_prepared:
        if allow_xla_fallback and not force_streaming:
            Kr, Hr = params["w1"].shape
            Or = params["w3"].shape[1]
            if _padding_inflation(x.shape[0], Kr, Hr, Or) > 4.0:
                # Sub-tile problem: padding would dominate; XLA's fused small-GEMM path wins.
                return _xla_forward_raw(x, params, compute_dtype)
        params = prepare_params(params, compute_dtype=compute_dtype)
    p = params

    cd = p["compute_dtype"]
    K, H, O, K_pad, H_pad, O_pad = p["dims"]
    B, Kx = x.shape
    if Kx != K:
        raise ValueError(f"input feature dim {Kx} != expected {K}")

    out_dtype = x.dtype
    w_isz = jnp.dtype(cd).itemsize
    out_isz = jnp.dtype(out_dtype).itemsize
    budget = _vmem_budget_bytes()
    vmem_limit = int(budget)

    B_pad = _round_up(B, 16)  # sublane-aligned for both f32 and bf16 batch tiles
    tms = _tm_candidates(B_pad, block_m)
    xp = _pad_axis(_pad_axis(x, 0, B_pad), 1, K_pad).astype(cd)

    # Deeper x pipeline only when the activation DMA dominates the per-tile matmul work.
    x_bufs = 3 if K_pad >= 4 * H_pad else None

    def est_resident(tm):
        n_xb = 3 if x_bufs == 3 else 2
        return (n_xb * tm * K_pad * w_isz
                + 2 * tm * O_pad * out_isz
                + (K_pad * H_pad + H_pad * H_pad + H_pad * O_pad) * w_isz  # single-buffered weights
                + (2 * H_pad + O_pad) * 4
                + 2 * tm * H_pad * 4 + tm * O_pad * 4)                      # f32 temporaries

    resident_tm = None
    if not force_streaming:
        for tm in tms:
            if est_resident(tm) <= budget:
                resident_tm = tm
                break

    if resident_tm is not None:
        # ---------------- resident-weights path ----------------
        TM = resident_tm
        grid = (B_pad // TM,)

        def call_resident(wbuf):
            in_specs = [
                _spec((TM, K_pad), lambda i: (i, 0), buffers=x_bufs),
                _spec((K_pad, H_pad), lambda i: (0, 0), buffers=wbuf),
                _spec((1, H_pad), lambda i: (0, 0), buffers=wbuf),
                _spec((H_pad, H_pad), lambda i: (0, 0), buffers=wbuf),
                _spec((1, H_pad), lambda i: (0, 0), buffers=wbuf),
                _spec((H_pad, O_pad), lambda i: (0, 0), buffers=wbuf),
                _spec((1, O_pad), lambda i: (0, 0), buffers=wbuf),
            ]
            return pl.pallas_call(
                _mlp_resident_kernel,
                out_shape=jax.ShapeDtypeStruct((B_pad, O_pad), out_dtype),
                grid=grid,
                in_specs=in_specs,
                out_specs=pl.BlockSpec((TM, O_pad), lambda i: (i, 0)),
                compiler_params=pltpu.CompilerParams(
                    dimension_semantics=("parallel",),
                    vmem_limit_bytes=vmem_limit,
                ),
            )(xp, p["w1"], p["b1"], p["w2"], p["b2"], p["w3"], p["b3"])

        try:
            out_pad = call_resident(1)      # block-invariant weights: single VMEM buffer
        except Exception:
            out_pad = call_resident(None)   # fall back to default double-buffering
    else:
        # ---------------- streaming (hidden-chunked) path ----------------
        TM, TH = None, None
        for tm in tms:
            th = hidden_chunk if hidden_chunk is not None else _choose_th(
                H_pad, budget, tm, K_pad, O_pad, w_isz, out_isz)
            if th is not None:
                TM, TH = tm, th
                break
        if TH is None:
            # TODO(synk): also tile w3 / the output columns when H_pad*O_pad alone exceeds VMEM.
            return _xla_forward_prepared(x, p)
        if TH % 128 != 0 or H_pad % TH != 0:
            raise ValueError("hidden_chunk must be a multiple of 128 that divides the padded hidden dim")
        n_hc = H_pad // TH
        grid = (B_pad // TM, n_hc)

        def call_streaming(wbuf):
            in_specs = [
                _spec((TM, K_pad), lambda i, j: (i, 0)),          # x tile resident across chunks
                _spec((K_pad, TH), lambda i, j: (0, j)),           # w1 column chunk
                _spec((1, TH), lambda i, j: (0, j)),               # b1 chunk
                _spec((TH, H_pad), lambda i, j: (j, 0)),           # w2 row chunk
                _spec((1, H_pad), lambda i, j: (0, 0), buffers=wbuf),
                _spec((H_pad, O_pad), lambda i, j: (0, 0), buffers=wbuf),
                _spec((1, O_pad), lambda i, j: (0, 0), buffers=wbuf),
            ]
            return pl.pallas_call(
                _mlp_streaming_kernel,
                out_shape=jax.ShapeDtypeStruct((B_pad, O_pad), out_dtype),
                grid=grid,
                in_specs=in_specs,
                out_specs=pl.BlockSpec((TM, O_pad), lambda i, j: (i, 0)),
                scratch_shapes=[pltpu.VMEM((TM, H_pad), jnp.float32)],
                compiler_params=pltpu.CompilerParams(
                    dimension_semantics=("parallel", "arbitrary"),
                    vmem_limit_bytes=vmem_limit,
                ),
            )(xp, p["w1"], p["b1"], p["w2"], p["b2"], p["w3"], p["b3"])

        try:
            out_pad = call_streaming(1)
        except Exception:
            out_pad = call_streaming(None)

    if B_pad == B and O_pad == O:
        return out_pad
    return out_pad[:B, :O]


def init_params(key, input_shape, hidden_units, output_shape, dtype=jnp.float32):
    """Deterministic init mirroring nn.Linear's U(-1/sqrt(fan_in), 1/sqrt(fan_in))."""
    ks = jax.random.split(key, 6)

    def linear(kw, kb, fan_in, fan_out):
        bound = 1.0 / jnp.sqrt(float(fan_in))
        w = jax.random.uniform(kw, (fan_in, fan_out), dtype, minval=-bound, maxval=bound)
        b = jax.random.uniform(kb, (1, fan_out), dtype, minval=-bound, maxval=bound)
        return w, b

    w1, b1 = linear(ks[0], ks[1], input_shape, hidden_units)
    w2, b2 = linear(ks[2], ks[3], hidden_units, hidden_units)
    w3, b3 = linear(ks[4], ks[5], hidden_units, output_shape)
    return dict(w1=w1, b1=b1, w2=w2, b2=b2, w3=w3, b3=b3)


def _reference_f32(x, params):
    """True f32 nn.Linear semantics (highest matmul precision)."""
    hp = jax.lax.Precision.HIGHEST
    h1 = jnp.maximum(jnp.dot(x, params["w1"], precision=hp) + params["b1"], 0.0)
    h2 = jnp.maximum(jnp.dot(h1, params["w2"], precision=hp) + params["b2"], 0.0)
    return jnp.dot(h2, params["w3"], precision=hp) + params["b3"]


if __name__ == "__main__":
    key = jax.random.PRNGKey(0)
    k_x, k_p, k_x2, k_p2 = jax.random.split(key, 4)

    # Small shapes implied by the module: batch=8, input=16, hidden=32, output=8.
    batch, input_shape, hidden_units, output_shape = 8, 16, 32, 8
    x = jax.random.normal(k_x, (batch, input_shape), jnp.float32)
    params = init_params(k_p, input_shape, hidden_units, output_shape)
    ref = _reference_f32(x, params)

    # 1) Resident-weights Pallas path, f32 compute (faithful to the PyTorch f32 module).
    prepared_f32 = prepare_params(params, compute_dtype=jnp.float32)
    out = jax.block_until_ready(feedforward_nn(x, prepared_f32, allow_xla_fallback=False))
    assert out.shape == (batch, output_shape)
    assert jnp.allclose(out, ref, atol=1e-2, rtol=1e-2), float(jnp.max(jnp.abs(out - ref)))

    # 2) Resident-weights path with bf16 MXU operands / f32 accumulation (opt-in fast path).
    prepared_bf16 = prepare_params(params, compute_dtype=jnp.bfloat16)
    out_bf16 = jax.block_until_ready(feedforward_nn(x, prepared_bf16, allow_xla_fallback=False))
    assert jnp.allclose(out_bf16, ref, atol=3e-2, rtol=3e-2)

    # 3) Default entry point (tiny problem -> XLA small-GEMM bypass) must agree too.
    out_default = jax.block_until_ready(feedforward_nn(x, params))
    assert jnp.allclose(out_default, ref, atol=1e-2, rtol=1e-2)

    # 4) Streaming (hidden-chunked) fallback path, forced at a size with 2 hidden chunks.
    b2_, in2, hid2, o2 = 40, 16, 256, 8
    x2 = jax.random.normal(k_x2, (b2_, in2), jnp.float32)
    params2 = init_params(k_p2, in2, hid2, o2)
    ref2 = _reference_f32(x2, params2)
    prepared2 = prepare_params(params2, compute_dtype=jnp.float32)
    out_stream = jax.block_until_ready(
        feedforward_nn(x2, prepared2, allow_xla_fallback=False,
                       force_streaming=True, hidden_chunk=128))
    assert out_stream.shape == (b2_, o2)
    assert jnp.allclose(out_stream, ref2, atol=1e-2, rtol=1e-2)

    print("KERNEL_OK")
</pallas_src>

<mosaic_0001>
module attributes {stable_mosaic.version = 11 : i64} {
  func.func @_mlp_resident_kernel(%arg0: i32, %arg1: memref<16x128xf32, #tpu.memory_space<vmem>>, %arg2: memref<128x128xf32, #tpu.memory_space<vmem>>, %arg3: memref<1x128xf32, #tpu.memory_space<vmem>>, %arg4: memref<128x128xf32, #tpu.memory_space<vmem>>, %arg5: memref<1x128xf32, #tpu.memory_space<vmem>>, %arg6: memref<128x128xf32, #tpu.memory_space<vmem>>, %arg7: memref<1x128xf32, #tpu.memory_space<vmem>>, %arg8: memref<16x128xf32, #tpu.memory_space<vmem>>) attributes {dimension_semantics = [#tpu.dimension_semantics<parallel>], iteration_bounds = array<i64: 1>, scalar_prefetch = 0 : i64, scratch_operands = 0 : i64, tpu.core_type = #tpu.core_type<tc>, window_params = [{transform_indices = @transform_0, window_bounds = array<i64: 16, 128>}, {pipeline_mode = #tpu.pipeline_mode<synchronous>, transform_indices = @transform_1, window_bounds = array<i64: 128, 128>}, {pipeline_mode = #tpu.pipeline_mode<synchronous>, transform_indices = @transform_2, window_bounds = array<i64: 1, 128>}, {pipeline_mode = #tpu.pipeline_mode<synchronous>, transform_indices = @transform_3, window_bounds = array<i64: 128, 128>}, {pipeline_mode = #tpu.pipeline_mode<synchronous>, transform_indices = @transform_4, window_bounds = array<i64: 1, 128>}, {pipeline_mode = #tpu.pipeline_mode<synchronous>, transform_indices = @transform_5, window_bounds = array<i64: 128, 128>}, {pipeline_mode = #tpu.pipeline_mode<synchronous>, transform_indices = @transform_6, window_bounds = array<i64: 1, 128>}, {transform_indices = @transform_7, window_bounds = array<i64: 16, 128>}]} {
    %c0 = arith.constant 0 : index
    %c0_0 = arith.constant 0 : index
    %0 = vector.load %arg1[%c0, %c0_0] : memref<16x128xf32, #tpu.memory_space<vmem>>, vector<16x128xf32>
    %c0_1 = arith.constant 0 : index
    %c0_2 = arith.constant 0 : index
    %1 = vector.load %arg2[%c0_1, %c0_2] : memref<128x128xf32, #tpu.memory_space<vmem>>, vector<128x128xf32>
    %cst = arith.constant dense<0.000000e+00> : vector<16x128xf32>
    %2 = tpu.matmul %0, %1, %cst {dimension_numbers = #tpu.dot_dimension_numbers<[1], [0], [0], [1], [0, 0, 1, 1], [], []>} : vector<16x128xf32>, vector<128x128xf32>, vector<16x128xf32> -> vector<16x128xf32>
    %c0_3 = arith.constant 0 : index
    %c0_4 = arith.constant 0 : index
    %3 = vector.load %arg3[%c0_3, %c0_4] : memref<1x128xf32, #tpu.memory_space<vmem>>, vector<1x128xf32>
    %4 = vector.broadcast %3 : vector<1x128xf32> to vector<16x128xf32>
    %5 = arith.addf %2, %4 : vector<16x128xf32>
    %cst_5 = arith.constant 0.000000e+00 : f32
    %6 = vector.broadcast %cst_5 : f32 to vector<16x128xf32>
    %7 = arith.maximumf %5, %6 : vector<16x128xf32>
    %c0_6 = arith.constant 0 : index
    %c0_7 = arith.constant 0 : index
    %8 = vector.load %arg4[%c0_6, %c0_7] : memref<128x128xf32, #tpu.memory_space<vmem>>, vector<128x128xf32>
    %cst_8 = arith.constant dense<0.000000e+00> : vector<16x128xf32>
    %9 = tpu.matmul %7, %8, %cst_8 {dimension_numbers = #tpu.dot_dimension_numbers<[1], [0], [0], [1], [0, 0, 1, 1], [], []>} : vector<16x128xf32>, vector<128x128xf32>, vector<16x128xf32> -> vector<16x128xf32>
    %c0_9 = arith.constant 0 : index
    %c0_10 = arith.constant 0 : index
    %10 = vector.load %arg5[%c0_9, %c0_10] : memref<1x128xf32, #tpu.memory_space<vmem>>, vector<1x128xf32>
    %11 = vector.broadcast %10 : vector<1x128xf32> to vector<16x128xf32>
    %12 = arith.addf %9, %11 : vector<16x128xf32>
    %cst_11 = arith.constant 0.000000e+00 : f32
    %13 = vector.broadcast %cst_11 : f32 to vector<16x128xf32>
    %14 = arith.maximumf %12, %13 : vector<16x128xf32>
    %c0_12 = arith.constant 0 : index
    %c0_13 = arith.constant 0 : index
    %15 = vector.load %arg6[%c0_12, %c0_13] : memref<128x128xf32, #tpu.memory_space<vmem>>, vector<128x128xf32>
    %cst_14 = arith.constant dense<0.000000e+00> : vector<16x128xf32>
    %16 = tpu.matmul %14, %15, %cst_14 {dimension_numbers = #tpu.dot_dimension_numbers<[1], [0], [0], [1], [0, 0, 1, 1], [], []>} : vector<16x128xf32>, vector<128x128xf32>, vector<16x128xf32> -> vector<16x128xf32>
    %c0_15 = arith.constant 0 : index
    %c0_16 = arith.constant 0 : index
    %17 = vector.load %arg7[%c0_15, %c0_16] : memref<1x128xf32, #tpu.memory_space<vmem>>, vector<1x128xf32>
    %18 = vector.broadcast %17 : vector<1x128xf32> to vector<16x128xf32>
    %19 = arith.addf %16, %18 : vector<16x128xf32>
    %c0_17 = arith.constant 0 : index
    %c0_18 = arith.constant 0 : index
    %20 = vector.load %arg8[%c0_17, %c0_18] : memref<16x128xf32, #tpu.memory_space<vmem>>, vector<16x128xf32>
    tpu.vector_store %arg8[%c0_17, %c0_18], %19 {strides = array<i32>} : memref<16x128xf32, #tpu.memory_space<vmem>>, vector<16x128xf32>,
    return
  }
  func.func @transform_0(%arg0: i32) -> (i32, i32) {
    %c0_i32 = arith.constant 0 : i32
    %c0_i32_0 = arith.constant 0 : i32
    return %arg0, %c0_i32 : i32, i32
  }
  func.func @transform_1(%arg0: i32) -> (i32, i32) {
    %c0_i32 = arith.constant 0 : i32
    %c0_i32_0 = arith.constant 0 : i32
    %c0_i32_1 = arith.constant 0 : i32
    return %c0_i32, %c0_i32_0 : i32, i32
  }
  func.func @transform_2(%arg0: i32) -> (i32, i32) {
    %c0_i32 = arith.constant 0 : i32
    %c0_i32_0 = arith.constant 0 : i32
    %c0_i32_1 = arith.constant 0 : i32
    return %c0_i32, %c0_i32_0 : i32, i32
  }
  func.func @transform_3(%arg0: i32) -> (i32, i32) {
    %c0_i32 = arith.constant 0 : i32
    %c0_i32_0 = arith.constant 0 : i32
    %c0_i32_1 = arith.constant 0 : i32
    return %c0_i32, %c0_i32_0 : i32, i32
  }
  func.func @transform_4(%arg0: i32) -> (i32, i32) {
    %c0_i32 = arith.constant 0 : i32
    %c0_i32_0 = arith.constant 0 : i32
    %c0_i32_1 = arith.constant 0 : i32
    return %c0_i32, %c0_i32_0 : i32, i32
  }
  func.func @transform_5(%arg0: i32) -> (i32, i32) {
    %c0_i32 = arith.constant 0 : i32
    %c0_i32_0 = arith.constant 0 : i32
    %c0_i32_1 = arith.constant 0 : i32
    return %c0_i32, %c0_i32_0 : i32, i32
  }
  func.func @transform_6(%arg0: i32) -> (i32, i32) {
    %c0_i32 = arith.constant 0 : i32
    %c0_i32_0 = arith.constant 0 : i32
    %c0_i32_1 = arith.constant 0 : i32
    return %c0_i32, %c0_i32_0 : i32, i32
  }
  func.func @transform_7(%arg0: i32) -> (i32, i32) {
    %c0_i32 = arith.constant 0 : i32
    %c0_i32_0 = arith.constant 0 : i32
    return %arg0, %c0_i32 : i32, i32
  }
}

module attributes {stable_mosaic.version = 11 : i64} {
  func.func @_mlp_resident_kernel(%arg0: i32, %arg1: memref<16x128xf32, #tpu.memory_space<vmem>>, %arg2: memref<128x128xf32, #tpu.memory_space<vmem>>, %arg3: memref<1x128xf32, #tpu.memory_space<vmem>>, %arg4: memref<128x128xf32, #tpu.memory_space<vmem>>, %arg5: memref<1x128xf32, #tpu.memory_space<vmem>>, %arg6: memref<128x128xf32, #tpu.memory_space<vmem>>, %arg7: memref<1x128xf32, #tpu.memory_space<vmem>>, %arg8: memref<16x128xf32, #tpu.memory_space<vmem>>) attributes {dimension_semantics = [#tpu.dimension_semantics<parallel>], iteration_bounds = array<i64: 1>, scalar_prefetch = 0 : i64, scratch_operands = 0 : i64, tpu.core_type = #tpu.core_type<tc>, window_params = [{transform_indices = @transform_0, window_bounds = array<i64: 16, 128>}, {pipeline_mode = #tpu.pipeline_mode<synchronous>, transform_indices = @transform_1, window_bounds = array<i64: 128, 128>}, {pipeline_mode = #tpu.pipeline_mode<synchronous>, transform_indices = @transform_2, window_bounds = array<i64: 1, 128>}, {pipeline_mode = #tpu.pipeline_mode<synchronous>, transform_indices = @transform_3, window_bounds = array<i64: 128, 128>}, {pipeline_mode = #tpu.pipeline_mode<synchronous>, transform_indices = @transform_4, window_bounds = array<i64: 1, 128>}, {pipeline_mode = #tpu.pipeline_mode<synchronous>, transform_indices = @transform_5, window_bounds = array<i64: 128, 128>}, {pipeline_mode = #tpu.pipeline_mode<synchronous>, transform_indices = @transform_6, window_bounds = array<i64: 1, 128>}, {transform_indices = @transform_7, window_bounds = array<i64: 16, 128>}]} {
    %c0 = arith.constant 0 : index
    %c0_0 = arith.constant 0 : index
    %0 = vector.load %arg1[%c0, %c0_0] : memref<16x128xf32, #tpu.memory_space<vmem>>, vector<16x128xf32>
    %c0_1 = arith.constant 0 : index
    %c0_2 = arith.constant 0 : index
    %1 = vector.load %arg2[%c0_1, %c0_2] : memref<128x128xf32, #tpu.memory_space<vmem>>, vector<128x128xf32>
    %cst = arith.constant dense<0.000000e+00> : vector<16x128xf32>
    %2 = tpu.matmul %0, %1, %cst {dimension_numbers = #tpu.dot_dimension_numbers<[1], [0], [0], [1], [0, 0, 1, 1], [], []>} : vector<16x128xf32>, vector<128x128xf32>, vector<16x128xf32> -> vector<16x128xf32>
    %c0_3 = arith.constant 0 : index
    %c0_4 = arith.constant 0 : index
    %3 = vector.load %arg3[%c0_3, %c0_4] : memref<1x128xf32, #tpu.memory_space<vmem>>, vector<1x128xf32>
    %4 = vector.broadcast %3 : vector<1x128xf32> to vector<16x128xf32>
    %5 = arith.addf %2, %4 : vector<16x128xf32>
    %cst_5 = arith.constant 0.000000e+00 : f32
    %6 = vector.broadcast %cst_5 : f32 to vector<16x128xf32>
    %7 = arith.maximumf %5, %6 : vector<16x128xf32>
    %c0_6 = arith.constant 0 : index
    %c0_7 = arith.constant 0 : index
    %8 = vector.load %arg4[%c0_6, %c0_7] : memref<128x128xf32, #tpu.memory_space<vmem>>, vector<128x128xf32>
    %cst_8 = arith.constant dense<0.000000e+00> : vector<16x128xf32>
    %9 = tpu.matmul %7, %8, %cst_8 {dimension_numbers = #tpu.dot_dimension_numbers<[1], [0], [0], [1], [0, 0, 1, 1], [], []>} : vector<16x128xf32>, vector<128x128xf32>, vector<16x128xf32> -> vector<16x128xf32>
    %c0_9 = arith.constant 0 : index
    %c0_10 = arith.constant 0 : index
    %10 = vector.load %arg5[%c0_9, %c0_10] : memref<1x128xf32, #tpu.memory_space<vmem>>, vector<1x128xf32>
    %11 = vector.broadcast %10 : vector<1x128xf32> to vector<16x128xf32>
    %12 = arith.addf %9, %11 : vector<16x128xf32>
    %cst_11 = arith.constant 0.000000e+00 : f32
    %13 = vector.broadcast %cst_11 : f32 to vector<16x128xf32>
    %14 = arith.maximumf %12, %13 : vector<16x128xf32>
    %c0_12 = arith.constant 0 : index
    %c0_13 = arith.constant 0 : index
    %15 = vector.load %arg6[%c0_12, %c0_13] : memref<128x128xf32, #tpu.memory_space<vmem>>, vector<128x128xf32>
    %cst_14 = arith.constant dense<0.000000e+00> : vector<16x128xf32>
    %16 = tpu.matmul %14, %15, %cst_14 {dimension_numbers = #tpu.dot_dimension_numbers<[1], [0], [0], [1], [0, 0, 1, 1], [], []>} : vector<16x128xf32>, vector<128x128xf32>, vector<16x128xf32> -> vector<16x128xf32>
    %c0_15 = arith.constant 0 : index
    %c0_16 = arith.constant 0 : index
    %17 = vector.load %arg7[%c0_15, %c0_16] : memref<1x128xf32, #tpu.memory_space<vmem>>, vector<1x128xf32>
    %18 = vector.broadcast %17 : vector<1x128xf32> to vector<16x128xf32>
    %19 = arith.addf %16, %18 : vector<16x128xf32>
    %c0_17 = arith.constant 0 : index
    %c0_18 = arith.constant 0 : index
    %20 = vector.load %arg8[%c0_17, %c0_18] : memref<16x128xf32, #tpu.memory_space<vmem>>, vector<16x128xf32>
    tpu.vector_store %arg8[%c0_17, %c0_18], %19 {strides = array<i32>} : memref<16x128xf32, #tpu.memory_space<vmem>>, vector<16x128xf32>,
    return
  }
  func.func @transform_0(%arg0: i32) -> (i32, i32) {
    %c0_i32 = arith.constant 0 : i32
    %c0_i32_0 = arith.constant 0 : i32
    return %arg0, %c0_i32 : i32, i32
  }
  func.func @transform_1(%arg0: i32) -> (i32, i32) {
    %c0_i32 = arith.constant 0 : i32
    %c0_i32_0 = arith.constant 0 : i32
    %c0_i32_1 = arith.constant 0 : i32
    return %c0_i32, %c0_i32_0 : i32, i32
  }
  func.func @transform_2(%arg0: i32) -> (i32, i32) {
    %c0_i32 = arith.constant 0 : i32
    %c0_i32_0 = arith.constant 0 : i32
    %c0_i32_1 = arith.constant 0 : i32
    return %c0_i32, %c0_i32_0 : i32, i32
  }
  func.func @transform_3(%arg0: i32) -> (i32, i32) {
    %c0_i32 = arith.constant 0 : i32
    %c0_i32_0 = arith.constant 0 : i32
    %c0_i32_1 = arith.constant 0 : i32
    return %c0_i32, %c0_i32_0 : i32, i32
  }
  func.func @transform_4(%arg0: i32) -> (i32, i32) {
    %c0_i32 = arith.constant 0 : i32
    %c0_i32_0 = arith.constant 0 : i32
    %c0_i32_1 = arith.constant 0 : i32
    return %c0_i32, %c0_i32_0 : i32, i32
  }
  func.func @transform_5(%arg0: i32) -> (i32, i32) {
    %c0_i32 = arith.constant 0 : i32
    %c0_i32_0 = arith.constant 0 : i32
    %c0_i32_1 = arith.constant 0 : i32
    return %c0_i32, %c0_i32_0 : i32, i32
  }
  func.func @transform_6(%arg0: i32) -> (i32, i32) {
    %c0_i32 = arith.constant 0 : i32
    %c0_i32_0 = arith.constant 0 : i32
    %c0_i32_1 = arith.constant 0 : i32
    return %c0_i32, %c0_i32_0 : i32, i32
  }
  func.func @transform_7(%arg0: i32) -> (i32, i32) {
    %c0_i32 = arith.constant 0 : i32
    %c0_i32_0 = arith.constant 0 : i32
    return %arg0, %c0_i32 : i32, i32
  }
}

</mosaic_0001>

<llo_original>
// kernel: tpu_custom_call.1
$region0: #{tpu_custom_call.1}
  #allocation0 [shape = 'u32[]', space=smem, size = 0x4, offset = 0x4, fixed_abs, tag = 'smem constant byte address 0x4 - core index']
  #allocation1 [shape = 'u32[144,128]{1,0:T(1,128)}', space=vmem, size = 0x12000, scoped, tag = 'internal scratch']
  %s0 = inlined_call_operand.hbm [shape: f32[16,128], index: 0, kind: input, shape index: {}]
  %s1 = inlined_call_operand.hbm [shape: f32[128,128], index: 1, kind: input, shape index: {}]
  %s2 = inlined_call_operand.vmem [shape: f32[1,128], index: 2, kind: input, shape index: {}]
  %s3 = inlined_call_operand.hbm [shape: f32[128,128], index: 3, kind: input, shape index: {}]
  %s4 = inlined_call_operand.vmem [shape: f32[1,128], index: 4, kind: input, shape index: {}]
  %s5 = inlined_call_operand.hbm [shape: f32[128,128], index: 5, kind: input, shape index: {}]
  %s6 = inlined_call_operand.vmem [shape: f32[1,128], index: 6, kind: input, shape index: {}]
  %s7 = inlined_call_operand.hbm [shape: f32[16,128], index: 7, kind: output, shape index: {}]
  %s8 = sld [smem:[#allocation0]]
  $region54: #{tpu_custom_call.1} parent=0
    _
  %s10 = ssub.s32 1, %s8
  %s11 = scalar_select 0, %s10, %s8
  $region1: #{tpu_custom_call.1} parent=0
    #allocation2 [shape = 'u8[8192]{0}', space=vmem, size = 0x2000, scoped, tag = 'input window, operand 0, single buffered']
    #allocation3 [shape = 's32[1]{0}', space=sflag, size = 0x4, scoped, tag = 'scoped memory for tpu_custom_call.1']
    #allocation4 [shape = 's32[1]{0}', space=sflag, size = 0x4, scoped, tag = 'scoped memory for tpu_custom_call.1']
    #allocation5 [shape = 'u8[65536]{0}', space=vmem, size = 0x10000, scoped, tag = 'input window, operand 1, single buffered']
    #allocation6 [shape = 's32[1]{0}', space=sflag, size = 0x4, scoped, tag = 'scoped memory for tpu_custom_call.1']
    #allocation7 [shape = 'u8[65536]{0}', space=vmem, size = 0x10000, scoped, tag = 'input window, operand 3, single buffered']
    #allocation8 [shape = 'u8[65536]{0}', space=vmem, size = 0x10000, scoped, tag = 'input window, operand 5, single buffered']
    #allocation9 [shape = 's32[1]{0}', space=sflag, size = 0x4, scoped, tag = 'scoped memory for tpu_custom_call.1']
    #allocation10 [shape = 'u8[8192]{0}', space=vmem, size = 0x2000, scoped, tag = 'output window, operand 0, single buffered']
    %12 = vsyncpa [#allocation3], 0
    %13 = vsyncpa [#allocation6], 0
    %14 = vsyncpa [#allocation9], 0
    %15 = vsyncpa [#allocation4], 0
    // Predicated region
    $region2: #{tpu_custom_call.1} parent=1 // pred_check
      _
    $region3: #{tpu_custom_call.1} parent=1 // pred_check_branch
      %17 = sbr.rel (0) target = $region5
    $region4: #{tpu_custom_call.1} parent=1 // pred_region
      %s19 = ssub.s32 256, 256
      %20 = vsyncadd [#allocation3], %s19
      %s21 = sshll.u32 [#allocation2], 4
      %s22 = int_to_ptr.vmem [resolvable:$true] %s21
      %27 = dma.hbm_to_vmem [thread:$0]  %s0, 256, %s22, [#allocation3], 128, 128, 8
    $region5: #{tpu_custom_call.1} parent=1 // pred_fallthru
      _
    // Predicated region
    $region6: #{tpu_custom_call.1} parent=1 // pred_check
      _
    $region7: #{tpu_custom_call.1} parent=1 // pred_check_branch
      %29 = sbr.rel (0) target = $region9
    $region8: #{tpu_custom_call.1} parent=1 // pred_region
      %s31 = ssub.s32 2048, 2048
      %32 = vsyncadd [#allocation6], %s31
      %s33 = sshll.u32 [#allocation5], 4
      %s34 = int_to_ptr.vmem [resolvable:$true] %s33
      %39 = dma.hbm_to_vmem [thread:$0]  %s1, 2048, %s34, [#allocation6], 128, 128, 8
    $region9: #{tpu_custom_call.1} parent=1 // pred_fallthru
      _
    // Predicated region
    $region10: #{tpu_custom_call.1} parent=1 // pred_check
      _
    $region11: #{tpu_custom_call.1} parent=1 // pred_check_branch
      %41 = sbr.rel (0) target = $region13
    $region12: #{tpu_custom_call.1} parent=1 // pred_region
      _
    $region13: #{tpu_custom_call.1} parent=1 // pred_fallthru
      _
    // Predicated region
    $region14: #{tpu_custom_call.1} parent=1 // pred_check
      _
    $region15: #{tpu_custom_call.1} parent=1 // pred_check_branch
      %43 = sbr.rel (0) target = $region17
    $region16: #{tpu_custom_call.1} parent=1 // pred_region
      %s45 = ssub.s32 2048, 2048
      %46 = vsyncadd [#allocation6], %s45
      %s47 = sshll.u32 [#allocation7], 4
      %s48 = int_to_ptr.vmem [resolvable:$true] %s47
      %53 = dma.hbm_to_vmem [thread:$0]  %s3, 2048, %s48, [#allocation6], 128, 128, 8
    $region17: #{tpu_custom_call.1} parent=1 // pred_fallthru
      _
    // Predicated region
    $region18: #{tpu_custom_call.1} parent=1 // pred_check
      _
    $region19: #{tpu_custom_call.1} parent=1 // pred_check_branch
      %55 = sbr.rel (0) target = $region21
    $region20: #{tpu_custom_call.1} parent=1 // pred_region
      _
    $region21: #{tpu_custom_call.1} parent=1 // pred_fallthru
      _
    // Predicated region
    $region22: #{tpu_custom_call.1} parent=1 // pred_check
      _
    $region23: #{tpu_custom_call.1} parent=1 // pred_check_branch
      %57 = sbr.rel (0) target = $region25
    $region24: #{tpu_custom_call.1} parent=1 // pred_region
      %s59 = ssub.s32 2048, 2048
      %60 = vsyncadd [#allocation9], %s59
      %s61 = sshll.u32 [#allocation8], 4
      %s62 = int_to_ptr.vmem [resolvable:$true] %s61
      %67 = dma.hbm_to_vmem [thread:$0]  %s5, 2048, %s62, [#allocation9], 128, 128, 8
    $region25: #{tpu_custom_call.1} parent=1 // pred_fallthru
      _
    // Predicated region
    $region26: #{tpu_custom_call.1} parent=1 // pred_check
      _
    $region27: #{tpu_custom_call.1} parent=1 // pred_check_branch
      %69 = sbr.rel (0) target = $region29
    $region28: #{tpu_custom_call.1} parent=1 // pred_region
      _
    $region29: #{tpu_custom_call.1} parent=1 // pred_fallthru
      _
    // Predicated region
    $region30: #{tpu_custom_call.1} parent=1 // pred_check
      _
    $region31: #{tpu_custom_call.1} parent=1 // pred_check_branch
      %71 = sbr.rel (0) target = $region33
    $region32: #{tpu_custom_call.1} parent=1 // pred_region
      %72 = dma.done [#allocation3], 256
    $region33: #{tpu_custom_call.1} parent=1 // pred_fallthru
      _
    // Predicated region
    $region34: #{tpu_custom_call.1} parent=1 // pred_check
      _
    $region35: #{tpu_custom_call.1} parent=1 // pred_check_branch
      %74 = sbr.rel (0) target = $region37
    $region36: #{tpu_custom_call.1} parent=1 // pred_region
      %75 = dma.done [#allocation6], 2048
    $region37: #{tpu_custom_call.1} parent=1 // pred_fallthru
      _
    // Predicated region
    $region38: #{tpu_custom_call.1} parent=1 // pred_check
      _
    $region39: #{tpu_custom_call.1} parent=1 // pred_check_branch
      %77 = sbr.rel (0) target = $region41
    $region40: #{tpu_custom_call.1} parent=1 // pred_region
      %78 = dma.done [#allocation6], 2048
    $region41: #{tpu_custom_call.1} parent=1 // pred_fallthru
      _
    // Predicated region
    $region42: #{tpu_custom_call.1} parent=1 // pred_check
      _
    $region43: #{tpu_custom_call.1} parent=1 // pred_check_branch
      %80 = sbr.rel (0) target = $region45
    $region44: #{tpu_custom_call.1} parent=1 // pred_region
      %81 = dma.done [#allocation9], 2048
    $region45: #{tpu_custom_call.1} parent=1 // pred_fallthru
      _
    %v82 = vld [vmem:[#allocation2] sm:$0xff]
    %v83 = vld [vmem:[#allocation2 + $0x8] sm:$0xff]
    %v84 = vld [vmem:[#allocation5] sm:$0xff]
    %v85 = vld [vmem:[#allocation5 + $0x8] sm:$0xff]
    %v86 = vld [vmem:[#allocation5 + $0x10] sm:$0xff]
    %v87 = vld [vmem:[#allocation5 + $0x18] sm:$0xff]
    %v88 = vld [vmem:[#allocation5 + $0x20] sm:$0xff]
    %v89 = vld [vmem:[#allocation5 + $0x28] sm:$0xff]
    %v90 = vld [vmem:[#allocation5 + $0x30] sm:$0xff]
    %v91 = vld [vmem:[#allocation5 + $0x38] sm:$0xff]
    %v92 = vld [vmem:[#allocation5 + $0x40] sm:$0xff]
    %v93 = vld [vmem:[#allocation5 + $0x48] sm:$0xff]
    %v94 = vld [vmem:[#allocation5 + $0x50] sm:$0xff]
    %v95 = vld [vmem:[#allocation5 + $0x58] sm:$0xff]
    %v96 = vld [vmem:[#allocation5 + $0x60] sm:$0xff]
    %v97 = vld [vmem:[#allocation5 + $0x68] sm:$0xff]
    %v98 = vld [vmem:[#allocation5 + $0x70] sm:$0xff]
    %v99 = vld [vmem:[#allocation5 + $0x78] sm:$0xff]
    %v100 = vld [vmem:[%s2] sm:$0x1]
    %v102 = vlaneseq
    %v103 = vshrl.u32 %v102, 7
    %v104 = vsub.s32 0, %v103
    %v105 = vrot.slane %v100, %v104
    %107 = vmatprep.subr.mxu0 0.0
    %108 = vmatpush1.msra.mxu0 %v84
    %109 = vmatprep.subr.mxu0 0.0
    %110 = vmatpush1.msra.mxu0 %v85
    %111 = vmatprep.subr.mxu0 0.0
    %112 = vmatpush1.msra.mxu0 %v86
    %113 = vmatprep.subr.mxu0 0.0
    %114 = vmatpush1.msra.mxu0 %v87
    %115 = vmatprep.subr.mxu0 0.0
    %116 = vmatpush1.msra.mxu0 %v88
    %117 = vmatprep.subr.mxu0 0.0
    %118 = vmatpush1.msra.mxu0 %v89
    %119 = vmatprep.subr.mxu0 0.0
    %120 = vmatpush1.msra.mxu0 %v90
    %121 = vmatprep.subr.mxu0 0.0
    %122 = vmatpush1.msra.mxu0 %v91
    %123 = vmatprep.subr.mxu0 0.0
    %124 = vmatpush1.msra.mxu0 %v92
    %125 = vmatprep.subr.mxu0 0.0
    %126 = vmatpush1.msra.mxu0 %v93
    %127 = vmatprep.subr.mxu0 0.0
    %128 = vmatpush1.msra.mxu0 %v94
    %129 = vmatprep.subr.mxu0 0.0
    %130 = vmatpush1.msra.mxu0 %v95
    %131 = vmatprep.subr.mxu0 0.0
    %132 = vmatpush1.msra.mxu0 %v96
    %133 = vmatprep.subr.mxu0 0.0
    %134 = vmatpush1.msra.mxu0 %v97
    %135 = vmatprep.subr.mxu0 0.0
    %136 = vmatpush1.msra.mxu0 %v98
    %137 = vmatprep.subr.mxu0 0.0
    %138 = vmatpush1.msra.mxu0 %v99
    %139 = vmatprep.subr.mxu0 0.0
    %140 = vmatpush1.msra.mxu0 0.0
    %141 = vmatprep.subr.mxu0 0.0
    %142 = vmatpush1.msra.mxu0 0.0
    %143 = vmatprep.subr.mxu0 0.0
    %144 = vmatpush1.msra.mxu0 0.0
    %145 = vmatprep.subr.mxu0 0.0
    %146 = vmatpush1.msra.mxu0 0.0
    %147 = vmatprep.subr.mxu0 0.0
    %148 = vmatpush1.msra.mxu0 0.0
    %149 = vmatprep.subr.mxu0 0.0
    %150 = vmatpush1.msra.mxu0 0.0
    %151 = vmatprep.subr.mxu0 0.0
    %152 = vmatpush1.msra.mxu0 0.0
    %153 = vmatprep.subr.mxu0 0.0
    %154 = vmatpush1.msra.mxu0 0.0
    %155 = vmatprep.subr.mxu0 0.0
    %156 = vmatpush1.msra.mxu0 0.0
    %157 = vmatprep.subr.mxu0 0.0
    %158 = vmatpush1.msra.mxu0 0.0
    %159 = vmatprep.subr.mxu0 0.0
    %160 = vmatpush1.msra.mxu0 0.0
    %161 = vmatprep.subr.mxu0 0.0
    %162 = vmatpush1.msra.mxu0 0.0
    %163 = vmatprep.subr.mxu0 0.0
    %164 = vmatpush1.msra.mxu0 0.0
    %165 = vmatprep.subr.mxu0 0.0
    %166 = vmatpush1.msra.mxu0 0.0
    %167 = vmatprep.subr.mxu0 0.0
    %168 = vmatpush1.msra.mxu0 0.0
    %169 = vmatprep.subr.mxu0 0.0
    %170 = vmatpush1.msra.mxu0 0.0
    %171 = vmatprep.mubr.f32.mxu0 0.0
    %172 = vmatmul.mubr.f32.gmra.mrb[0].mxu0 %v82
    %v173 = vpop.f32.mrb[0].mxu0
    %v174 = vadd.f32 %v105, %v173
    %v175 = vpop.f32.mrb[0].mxu0
    %176 = vmatprep.mubr.f32.mxu0 0.0
    %177 = vmatmul.mubr.f32.gmra.mrb[0].mxu0 %v83
    %v178 = vpop.f32.mrb[0].mxu0
    %v179 = vadd.f32 %v105, %v178
    %v180 = vpop.f32.mrb[0].mxu0
    %181 = vdwg.mxu0
    %v182 = vmax.f32 %v174, 0.0
    %v183 = vmax.f32 %v179, 0.0
    %v184 = vld [vmem:[#allocation7] sm:$0xff]
    %v185 = vld [vmem:[#allocation7 + $0x8] sm:$0xff]
    %v186 = vld [vmem:[#allocation7 + $0x10] sm:$0xff]
    %v187 = vld [vmem:[#allocation7 + $0x18] sm:$0xff]
    %v188 = vld [vmem:[#allocation7 + $0x20] sm:$0xff]
    %v189 = vld [vmem:[#allocation7 + $0x28] sm:$0xff]
    %v190 = vld [vmem:[#allocation7 + $0x30] sm:$0xff]
    %v191 = vld [vmem:[#allocation7 + $0x38] sm:$0xff]
    %v192 = vld [vmem:[#allocation7 + $0x40] sm:$0xff]
    %v193 = vld [vmem:[#allocation7 + $0x48] sm:$0xff]
    %v194 = vld [vmem:[#allocation7 + $0x50] sm:$0xff]
    %v195 = vld [vmem:[#allocation7 + $0x58] sm:$0xff]
    %v196 = vld [vmem:[#allocation7 + $0x60] sm:$0xff]
    %v197 = vld [vmem:[#allocation7 + $0x68] sm:$0xff]
    %v198 = vld [vmem:[#allocation7 + $0x70] sm:$0xff]
    %v199 = vld [vmem:[#allocation7 + $0x78] sm:$0xff]
    %v200 = vld [vmem:[%s4] sm:$0x1]
    %v202 = vlaneseq
    %v203 = vshrl.u32 %v202, 7
    %v204 = vsub.s32 0, %v203
    %v205 = vrot.slane %v200, %v204
    %207 = vmatprep.subr.mxu0 0.0
    %208 = vmatpush1.msra.mxu0 %v184
    %209 = vmatprep.subr.mxu0 0.0
    %210 = vmatpush1.msra.mxu0 %v185
    %211 = vmatprep.subr.mxu0 0.0
    %212 = vmatpush1.msra.mxu0 %v186
    %213 = vmatprep.subr.mxu0 0.0
    %214 = vmatpush1.msra.mxu0 %v187
    %215 = vmatprep.subr.mxu0 0.0
    %216 = vmatpush1.msra.mxu0 %v188
    %217 = vmatprep.subr.mxu0 0.0
    %218 = vmatpush1.msra.mxu0 %v189
    %219 = vmatprep.subr.mxu0 0.0
    %220 = vmatpush1.msra.mxu0 %v190
    %221 = vmatprep.subr.mxu0 0.0
    %222 = vmatpush1.msra.mxu0 %v191
    %223 = vmatprep.subr.mxu0 0.0
    %224 = vmatpush1.msra.mxu0 %v192
    %225 = vmatprep.subr.mxu0 0.0
    %226 = vmatpush1.msra.mxu0 %v193
    %227 = vmatprep.subr.mxu0 0.0
    %228 = vmatpush1.msra.mxu0 %v194
    %229 = vmatprep.subr.mxu0 0.0
    %230 = vmatpush1.msra.mxu0 %v195
    %231 = vmatprep.subr.mxu0 0.0
    %232 = vmatpush1.msra.mxu0 %v196
    %233 = vmatprep.subr.mxu0 0.0
    %234 = vmatpush1.msra.mxu0 %v197
    %235 = vmatprep.subr.mxu0 0.0
    %236 = vmatpush1.msra.mxu0 %v198
    %237 = vmatprep.subr.mxu0 0.0
    %238 = vmatpush1.msra.mxu0 %v199
    %239 = vmatprep.subr.mxu0 0.0
    %240 = vmatpush1.msra.mxu0 0.0
    %241 = vmatprep.subr.mxu0 0.0
    %242 = vmatpush1.msra.mxu0 0.0
    %243 = vmatprep.subr.mxu0 0.0
    %244 = vmatpush1.msra.mxu0 0.0
    %245 = vmatprep.subr.mxu0 0.0
    %246 = vmatpush1.msra.mxu0 0.0
    %247 = vmatprep.subr.mxu0 0.0
    %248 = vmatpush1.msra.mxu0 0.0
    %249 = vmatprep.subr.mxu0 0.0
    %250 = vmatpush1.msra.mxu0 0.0
    %251 = vmatprep.subr.mxu0 0.0
    %252 = vmatpush1.msra.mxu0 0.0
    %253 = vmatprep.subr.mxu0 0.0
    %254 = vmatpush1.msra.mxu0 0.0
    %255 = vmatprep.subr.mxu0 0.0
    %256 = vmatpush1.msra.mxu0 0.0
    %257 = vmatprep.subr.mxu0 0.0
    %258 = vmatpush1.msra.mxu0 0.0
    %259 = vmatprep.subr.mxu0 0.0
    %260 = vmatpush1.msra.mxu0 0.0
    %261 = vmatprep.subr.mxu0 0.0
    %262 = vmatpush1.msra.mxu0 0.0
    %263 = vmatprep.subr.mxu0 0.0
    %264 = vmatpush1.msra.mxu0 0.0
    %265 = vmatprep.subr.mxu0 0.0
    %266 = vmatpush1.msra.mxu0 0.0
    %267 = vmatprep.subr.mxu0 0.0
    %268 = vmatpush1.msra.mxu0 0.0
    %269 = vmatprep.subr.mxu0 0.0
    %270 = vmatpush1.msra.mxu0 0.0
    %271 = vmatprep.mubr.f32.mxu0 0.0
    %272 = vmatmul.mubr.f32.gmra.mrb[0].mxu0 %v182
    %v273 = vpop.f32.mrb[0].mxu0
    %v274 = vadd.f32 %v205, %v273
    %v275 = vpop.f32.mrb[0].mxu0
    %276 = vmatprep.mubr.f32.mxu0 0.0
    %277 = vmatmul.mubr.f32.gmra.mrb[0].mxu0 %v183
    %v278 = vpop.f32.mrb[0].mxu0
    %v279 = vadd.f32 %v205, %v278
    %v280 = vpop.f32.mrb[0].mxu0
    %281 = vdwg.mxu0
    %v282 = vmax.f32 %v274, 0.0
    %v283 = vmax.f32 %v279, 0.0
    %v284 = vld [vmem:[#allocation8] sm:$0xff]
    %v285 = vld [vmem:[#allocation8 + $0x8] sm:$0xff]
    %v286 = vld [vmem:[#allocation8 + $0x10] sm:$0xff]
    %v287 = vld [vmem:[#allocation8 + $0x18] sm:$0xff]
    %v288 = vld [vmem:[#allocation8 + $0x20] sm:$0xff]
    %v289 = vld [vmem:[#allocation8 + $0x28] sm:$0xff]
    %v290 = vld [vmem:[#allocation8 + $0x30] sm:$0xff]
    %v291 = vld [vmem:[#allocation8 + $0x38] sm:$0xff]
    %v292 = vld [vmem:[#allocation8 + $0x40] sm:$0xff]
    %v293 = vld [vmem:[#allocation8 + $0x48] sm:$0xff]
    %v294 = vld [vmem:[#allocation8 + $0x50] sm:$0xff]
    %v295 = vld [vmem:[#allocation8 + $0x58] sm:$0xff]
    %v296 = vld [vmem:[#allocation8 + $0x60] sm:$0xff]
    %v297 = vld [vmem:[#allocation8 + $0x68] sm:$0xff]
    %v298 = vld [vmem:[#allocation8 + $0x70] sm:$0xff]
    %v299 = vld [vmem:[#allocation8 + $0x78] sm:$0xff]
    %v300 = vld [vmem:[%s6] sm:$0x1]
    %v302 = vlaneseq
    %v303 = vshrl.u32 %v302, 7
    %v304 = vsub.s32 0, %v303
    %v305 = vrot.slane %v300, %v304
    %307 = vmatprep.subr.mxu0 0.0
    %308 = vmatpush1.msra.mxu0 %v284
    %309 = vmatprep.subr.mxu0 0.0
    %310 = vmatpush1.msra.mxu0 %v285
    %311 = vmatprep.subr.mxu0 0.0
    %312 = vmatpush1.msra.mxu0 %v286
    %313 = vmatprep.subr.mxu0 0.0
    %314 = vmatpush1.msra.mxu0 %v287
    %315 = vmatprep.subr.mxu0 0.0
    %316 = vmatpush1.msra.mxu0 %v288
    %317 = vmatprep.subr.mxu0 0.0
    %318 = vmatpush1.msra.mxu0 %v289
    %319 = vmatprep.subr.mxu0 0.0
    %320 = vmatpush1.msra.mxu0 %v290
    %321 = vmatprep.subr.mxu0 0.0
    %322 = vmatpush1.msra.mxu0 %v291
    %323 = vmatprep.subr.mxu0 0.0
    %324 = vmatpush1.msra.mxu0 %v292
    %325 = vmatprep.subr.mxu0 0.0
    %326 = vmatpush1.msra.mxu0 %v293
    %327 = vmatprep.subr.mxu0 0.0
    %328 = vmatpush1.msra.mxu0 %v294
    %329 = vmatprep.subr.mxu0 0.0
    %330 = vmatpush1.msra.mxu0 %v295
    %331 = vmatprep.subr.mxu0 0.0
    %332 = vmatpush1.msra.mxu0 %v296
    %333 = vmatprep.subr.mxu0 0.0
    %334 = vmatpush1.msra.mxu0 %v297
    %335 = vmatprep.subr.mxu0 0.0
    %336 = vmatpush1.msra.mxu0 %v298
    %337 = vmatprep.subr.mxu0 0.0
    %338 = vmatpush1.msra.mxu0 %v299
    %339 = vmatprep.subr.mxu0 0.0
    %340 = vmatpush1.msra.mxu0 0.0
    %341 = vmatprep.subr.mxu0 0.0
    %342 = vmatpush1.msra.mxu0 0.0
    %343 = vmatprep.subr.mxu0 0.0
    %344 = vmatpush1.msra.mxu0 0.0
    %345 = vmatprep.subr.mxu0 0.0
    %346 = vmatpush1.msra.mxu0 0.0
    %347 = vmatprep.subr.mxu0 0.0
    %348 = vmatpush1.msra.mxu0 0.0
    %349 = vmatprep.subr.mxu0 0.0
    %350 = vmatpush1.msra.mxu0 0.0
    %351 = vmatprep.subr.mxu0 0.0
    %352 = vmatpush1.msra.mxu0 0.0
    %353 = vmatprep.subr.mxu0 0.0
    %354 = vmatpush1.msra.mxu0 0.0
    %355 = vmatprep.subr.mxu0 0.0
    %356 = vmatpush1.msra.mxu0 0.0
    %357 = vmatprep.subr.mxu0 0.0
    %358 = vmatpush1.msra.mxu0 0.0
    %359 = vmatprep.subr.mxu0 0.0
    %360 = vmatpush1.msra.mxu0 0.0
    %361 = vmatprep.subr.mxu0 0.0
    %362 = vmatpush1.msra.mxu0 0.0
    %363 = vmatprep.subr.mxu0 0.0
    %364 = vmatpush1.msra.mxu0 0.0
    %365 = vmatprep.subr.mxu0 0.0
    %366 = vmatpush1.msra.mxu0 0.0
    %367 = vmatprep.subr.mxu0 0.0
    %368 = vmatpush1.msra.mxu0 0.0
    %369 = vmatprep.subr.mxu0 0.0
    %370 = vmatpush1.msra.mxu0 0.0
    %371 = vmatprep.mubr.f32.mxu0 0.0
    %372 = vmatmul.mubr.f32.gmra.mrb[0].mxu0 %v282
    %v373 = vpop.f32.mrb[0].mxu0
    %v374 = vadd.f32 %v305, %v373
    %v375 = vpop.f32.mrb[0].mxu0
    %376 = vmatprep.mubr.f32.mxu0 0.0
    %377 = vmatmul.mubr.f32.gmra.mrb[0].mxu0 %v283
    %v378 = vpop.f32.mrb[0].mxu0
    %v379 = vadd.f32 %v305, %v378
    %v380 = vpop.f32.mrb[0].mxu0
    %381 = vdwg.mxu0
    %382 = vst [vmem:[#allocation10] sm:$0xff] %v374
    %383 = vst [vmem:[#allocation10 + $0x8] sm:$0xff] %v379
    // Predicated region
    $region46: #{tpu_custom_call.1} parent=1 // pred_check
      _
    $region47: #{tpu_custom_call.1} parent=1 // pred_check_branch
      %385 = sbr.rel (0) target = $region49
    $region48: #{tpu_custom_call.1} parent=1 // pred_region
      %s387 = ssub.s32 256, 256
      %388 = vsyncadd [#allocation4], %s387
      %s389 = sshll.u32 [#allocation10], 4
      %s390 = int_to_ptr.vmem [resolvable:$true] %s389
      %395 = dma.vmem_to_hbm [thread:$0]  %s390, 256, %s7, [#allocation4], 128, 128, 8
    $region49: #{tpu_custom_call.1} parent=1 // pred_fallthru
      _
    // Predicated region
    $region50: #{tpu_custom_call.1} parent=1 // pred_check
      _
    $region51: #{tpu_custom_call.1} parent=1 // pred_check_branch
      %397 = sbr.rel (0) target = $region53
    $region52: #{tpu_custom_call.1} parent=1 // pred_region
      %398 = dma.done [#allocation4], 256
    $region53: #{tpu_custom_call.1} parent=1 // pred_fallthru
      _
    %399 = vsyncpa [#allocation3], 1
    %400 = vsyncpa [#allocation6], 1
    %401 = vsyncpa [#allocation9], 1
    %402 = vsyncpa [#allocation4], 1

// kernel: tpu_custom_call.1
$region0: #{tpu_custom_call.1}
  #allocation0 [shape = 'u32[]', space=smem, size = 0x4, offset = 0x4, fixed_abs, tag = 'smem constant byte address 0x4 - core index']
  #allocation1 [shape = 'u32[144,128]{1,0:T(1,128)}', space=vmem, size = 0x12000, scoped, tag = 'internal scratch']
  %s0 = inlined_call_operand.hbm [shape: f32[16,128], index: 0, kind: input, shape index: {}]
  %s1 = inlined_call_operand.hbm [shape: f32[128,128], index: 1, kind: input, shape index: {}]
  %s2 = inlined_call_operand.vmem [shape: f32[1,128], index: 2, kind: input, shape index: {}]
  %s3 = inlined_call_operand.hbm [shape: f32[128,128], index: 3, kind: input, shape index: {}]
  %s4 = inlined_call_operand.vmem [shape: f32[1,128], index: 4, kind: input, shape index: {}]
  %s5 = inlined_call_operand.hbm [shape: f32[128,128], index: 5, kind: input, shape index: {}]
  %s6 = inlined_call_operand.vmem [shape: f32[1,128], index: 6, kind: input, shape index: {}]
  %s7 = inlined_call_operand.hbm [shape: f32[16,128], index: 7, kind: output, shape index: {}]
  %s8 = sld [smem:[#allocation0]]
  $region54: #{tpu_custom_call.1} parent=0
    _
  %s10 = ssub.s32 1, %s8
  %s11 = scalar_select 0, %s10, %s8
  $region1: #{tpu_custom_call.1} parent=0
    #allocation2 [shape = 'u8[8192]{0}', space=vmem, size = 0x2000, scoped, tag = 'input window, operand 0, single buffered']
    #allocation3 [shape = 's32[1]{0}', space=sflag, size = 0x4, scoped, tag = 'scoped memory for tpu_custom_call.1']
    #allocation4 [shape = 's32[1]{0}', space=sflag, size = 0x4, scoped, tag = 'scoped memory for tpu_custom_call.1']
    #allocation5 [shape = 'u8[65536]{0}', space=vmem, size = 0x10000, scoped, tag = 'input window, operand 1, single buffered']
    #allocation6 [shape = 's32[1]{0}', space=sflag, size = 0x4, scoped, tag = 'scoped memory for tpu_custom_call.1']
    #allocation7 [shape = 'u8[65536]{0}', space=vmem, size = 0x10000, scoped, tag = 'input window, operand 3, single buffered']
    #allocation8 [shape = 'u8[65536]{0}', space=vmem, size = 0x10000, scoped, tag = 'input window, operand 5, single buffered']
    #allocation9 [shape = 's32[1]{0}', space=sflag, size = 0x4, scoped, tag = 'scoped memory for tpu_custom_call.1']
    #allocation10 [shape = 'u8[8192]{0}', space=vmem, size = 0x2000, scoped, tag = 'output window, operand 0, single buffered']
    %12 = vsyncpa [#allocation3], 0
    %13 = vsyncpa [#allocation6], 0
    %14 = vsyncpa [#allocation9], 0
    %15 = vsyncpa [#allocation4], 0
    // Predicated region
    $region2: #{tpu_custom_call.1} parent=1 // pred_check
      _
    $region3: #{tpu_custom_call.1} parent=1 // pred_check_branch
      %17 = sbr.rel (0) target = $region5
    $region4: #{tpu_custom_call.1} parent=1 // pred_region
      %s19 = ssub.s32 256, 256
      %20 = vsyncadd [#allocation3], %s19
      %s21 = sshll.u32 [#allocation2], 4
      %s22 = int_to_ptr.vmem [resolvable:$true] %s21
      %27 = dma.hbm_to_vmem [thread:$0]  %s0, 256, %s22, [#allocation3], 128, 128, 8
    $region5: #{tpu_custom_call.1} parent=1 // pred_fallthru
      _
    // Predicated region
    $region6: #{tpu_custom_call.1} parent=1 // pred_check
      _
    $region7: #{tpu_custom_call.1} parent=1 // pred_check_branch
      %29 = sbr.rel (0) target = $region9
    $region8: #{tpu_custom_call.1} parent=1 // pred_region
      %s31 = ssub.s32 2048, 2048
      %32 = vsyncadd [#allocation6], %s31
      %s33 = sshll.u32 [#allocation5], 4
      %s34 = int_to_ptr.vmem [resolvable:$true] %s33
      %39 = dma.hbm_to_vmem [thread:$0]  %s1, 2048, %s34, [#allocation6], 128, 128, 8
    $region9: #{tpu_custom_call.1} parent=1 // pred_fallthru
      _
    // Predicated region
    $region10: #{tpu_custom_call.1} parent=1 // pred_check
      _
    $region11: #{tpu_custom_call.1} parent=1 // pred_check_branch
      %41 = sbr.rel (0) target = $region13
    $region12: #{tpu_custom_call.1} parent=1 // pred_region
      _
    $region13: #{tpu_custom_call.1} parent=1 // pred_fallthru
      _
    // Predicated region
    $region14: #{tpu_custom_call.1} parent=1 // pred_check
      _
    $region15: #{tpu_custom_call.1} parent=1 // pred_check_branch
      %43 = sbr.rel (0) target = $region17
    $region16: #{tpu_custom_call.1} parent=1 // pred_region
      %s45 = ssub.s32 2048, 2048
      %46 = vsyncadd [#allocation6], %s45
      %s47 = sshll.u32 [#allocation7], 4
      %s48 = int_to_ptr.vmem [resolvable:$true] %s47
      %53 = dma.hbm_to_vmem [thread:$0]  %s3, 2048, %s48, [#allocation6], 128, 128, 8
    $region17: #{tpu_custom_call.1} parent=1 // pred_fallthru
      _
    // Predicated region
    $region18: #{tpu_custom_call.1} parent=1 // pred_check
      _
    $region19: #{tpu_custom_call.1} parent=1 // pred_check_branch
      %55 = sbr.rel (0) target = $region21
    $region20: #{tpu_custom_call.1} parent=1 // pred_region
      _
    $region21: #{tpu_custom_call.1} parent=1 // pred_fallthru
      _
    // Predicated region
    $region22: #{tpu_custom_call.1} parent=1 // pred_check
      _
    $region23: #{tpu_custom_call.1} parent=1 // pred_check_branch
      %57 = sbr.rel (0) target = $region25
    $region24: #{tpu_custom_call.1} parent=1 // pred_region
      %s59 = ssub.s32 2048, 2048
      %60 = vsyncadd [#allocation9], %s59
      %s61 = sshll.u32 [#allocation8], 4
      %s62 = int_to_ptr.vmem [resolvable:$true] %s61
      %67 = dma.hbm_to_vmem [thread:$0]  %s5, 2048, %s62, [#allocation9], 128, 128, 8
    $region25: #{tpu_custom_call.1} parent=1 // pred_fallthru
      _
    // Predicated region
    $region26: #{tpu_custom_call.1} parent=1 // pred_check
      _
    $region27: #{tpu_custom_call.1} parent=1 // pred_check_branch
      %69 = sbr.rel (0) target = $region29
    $region28: #{tpu_custom_call.1} parent=1 // pred_region
      _
    $region29: #{tpu_custom_call.1} parent=1 // pred_fallthru
      _
    // Predicated region
    $region30: #{tpu_custom_call.1} parent=1 // pred_check
      _
    $region31: #{tpu_custom_call.1} parent=1 // pred_check_branch
      %71 = sbr.rel (0) target = $region33
    $region32: #{tpu_custom_call.1} parent=1 // pred_region
      %72 = dma.done [#allocation3], 256
    $region33: #{tpu_custom_call.1} parent=1 // pred_fallthru
      _
    // Predicated region
    $region34: #{tpu_custom_call.1} parent=1 // pred_check
      _
    $region35: #{tpu_custom_call.1} parent=1 // pred_check_branch
      %74 = sbr.rel (0) target = $region37
    $region36: #{tpu_custom_call.1} parent=1 // pred_region
      %75 = dma.done [#allocation6], 2048
    $region37: #{tpu_custom_call.1} parent=1 // pred_fallthru
      _
    // Predicated region
    $region38: #{tpu_custom_call.1} parent=1 // pred_check
      _
    $region39: #{tpu_custom_call.1} parent=1 // pred_check_branch
      %77 = sbr.rel (0) target = $region41
    $region40: #{tpu_custom_call.1} parent=1 // pred_region
      %78 = dma.done [#allocation6], 2048
    $region41: #{tpu_custom_call.1} parent=1 // pred_fallthru
      _
    // Predicated region
    $region42: #{tpu_custom_call.1} parent=1 // pred_check
      _
    $region43: #{tpu_custom_call.1} parent=1 // pred_check_branch
      %80 = sbr.rel (0) target = $region45
    $region44: #{tpu_custom_call.1} parent=1 // pred_region
      %81 = dma.done [#allocation9], 2048
    $region45: #{tpu_custom_call.1} parent=1 // pred_fallthru
      _
    %v82 = vld [vmem:[#allocation2] sm:$0xff]
    %v83 = vld [vmem:[#allocation2 + $0x8] sm:$0xff]
    %v84 = vld [vmem:[#allocation5] sm:$0xff]
    %v85 = vld [vmem:[#allocation5 + $0x8] sm:$0xff]
    %v86 = vld [vmem:[#allocation5 + $0x10] sm:$0xff]
    %v87 = vld [vmem:[#allocation5 + $0x18] sm:$0xff]
    %v88 = vld [vmem:[#allocation5 + $0x20] sm:$0xff]
    %v89 = vld [vmem:[#allocation5 + $0x28] sm:$0xff]
    %v90 = vld [vmem:[#allocation5 + $0x30] sm:$0xff]
    %v91 = vld [vmem:[#allocation5 + $0x38] sm:$0xff]
    %v92 = vld [vmem:[#allocation5 + $0x40] sm:$0xff]
    %v93 = vld [vmem:[#allocation5 + $0x48] sm:$0xff]
    %v94 = vld [vmem:[#allocation5 + $0x50] sm:$0xff]
    %v95 = vld [vmem:[#allocation5 + $0x58] sm:$0xff]
    %v96 = vld [vmem:[#allocation5 + $0x60] sm:$0xff]
    %v97 = vld [vmem:[#allocation5 + $0x68] sm:$0xff]
    %v98 = vld [vmem:[#allocation5 + $0x70] sm:$0xff]
    %v99 = vld [vmem:[#allocation5 + $0x78] sm:$0xff]
    %v100 = vld [vmem:[%s2] sm:$0x1]
    %v102 = vlaneseq
    %v103 = vshrl.u32 %v102, 7
    %v104 = vsub.s32 0, %v103
    %v105 = vrot.slane %v100, %v104
    %107 = vmatprep.subr.mxu0 0.0
    %108 = vmatpush1.msra.mxu0 %v84
    %109 = vmatprep.subr.mxu0 0.0
    %110 = vmatpush1.msra.mxu0 %v85
    %111 = vmatprep.subr.mxu0 0.0
    %112 = vmatpush1.msra.mxu0 %v86
    %113 = vmatprep.subr.mxu0 0.0
    %114 = vmatpush1.msra.mxu0 %v87
    %115 = vmatprep.subr.mxu0 0.0
    %116 = vmatpush1.msra.mxu0 %v88
    %117 = vmatprep.subr.mxu0 0.0
    %118 = vmatpush1.msra.mxu0 %v89
    %119 = vmatprep.subr.mxu0 0.0
    %120 = vmatpush1.msra.mxu0 %v90
    %121 = vmatprep.subr.mxu0 0.0
    %122 = vmatpush1.msra.mxu0 %v91
    %123 = vmatprep.subr.mxu0 0.0
    %124 = vmatpush1.msra.mxu0 %v92
    %125 = vmatprep.subr.mxu0 0.0
    %126 = vmatpush1.msra.mxu0 %v93
    %127 = vmatprep.subr.mxu0 0.0
    %128 = vmatpush1.msra.mxu0 %v94
    %129 = vmatprep.subr.mxu0 0.0
    %130 = vmatpush1.msra.mxu0 %v95
    %131 = vmatprep.subr.mxu0 0.0
    %132 = vmatpush1.msra.mxu0 %v96
    %133 = vmatprep.subr.mxu0 0.0
    %134 = vmatpush1.msra.mxu0 %v97
    %135 = vmatprep.subr.mxu0 0.0
    %136 = vmatpush1.msra.mxu0 %v98
    %137 = vmatprep.subr.mxu0 0.0
    %138 = vmatpush1.msra.mxu0 %v99
    %139 = vmatprep.subr.mxu0 0.0
    %140 = vmatpush1.msra.mxu0 0.0
    %141 = vmatprep.subr.mxu0 0.0
    %142 = vmatpush1.msra.mxu0 0.0
    %143 = vmatprep.subr.mxu0 0.0
    %144 = vmatpush1.msra.mxu0 0.0
    %145 = vmatprep.subr.mxu0 0.0
    %146 = vmatpush1.msra.mxu0 0.0
    %147 = vmatprep.subr.mxu0 0.0
    %148 = vmatpush1.msra.mxu0 0.0
    %149 = vmatprep.subr.mxu0 0.0
    %150 = vmatpush1.msra.mxu0 0.0
    %151 = vmatprep.subr.mxu0 0.0
    %152 = vmatpush1.msra.mxu0 0.0
    %153 = vmatprep.subr.mxu0 0.0
    %154 = vmatpush1.msra.mxu0 0.0
    %155 = vmatprep.subr.mxu0 0.0
    %156 = vmatpush1.msra.mxu0 0.0
    %157 = vmatprep.subr.mxu0 0.0
    %158 = vmatpush1.msra.mxu0 0.0
    %159 = vmatprep.subr.mxu0 0.0
    %160 = vmatpush1.msra.mxu0 0.0
    %161 = vmatprep.subr.mxu0 0.0
    %162 = vmatpush1.msra.mxu0 0.0
    %163 = vmatprep.subr.mxu0 0.0
    %164 = vmatpush1.msra.mxu0 0.0
    %165 = vmatprep.subr.mxu0 0.0
    %166 = vmatpush1.msra.mxu0 0.0
    %167 = vmatprep.subr.mxu0 0.0
    %168 = vmatpush1.msra.mxu0 0.0
    %169 = vmatprep.subr.mxu0 0.0
    %170 = vmatpush1.msra.mxu0 0.0
    %171 = vmatprep.mubr.f32.mxu0 0.0
    %172 = vmatmul.mubr.f32.gmra.mrb[0].mxu0 %v82
    %v173 = vpop.f32.mrb[0].mxu0
    %v174 = vadd.f32 %v105, %v173
    %v175 = vpop.f32.mrb[0].mxu0
    %176 = vmatprep.mubr.f32.mxu0 0.0
    %177 = vmatmul.mubr.f32.gmra.mrb[0].mxu0 %v83
    %v178 = vpop.f32.mrb[0].mxu0
    %v179 = vadd.f32 %v105, %v178
    %v180 = vpop.f32.mrb[0].mxu0
    %181 = vdwg.mxu0
    %v182 = vmax.f32 %v174, 0.0
    %v183 = vmax.f32 %v179, 0.0
    %v184 = vld [vmem:[#allocation7] sm:$0xff]
    %v185 = vld [vmem:[#allocation7 + $0x8] sm:$0xff]
    %v186 = vld [vmem:[#allocation7 + $0x10] sm:$0xff]
    %v187 = vld [vmem:[#allocation7 + $0x18] sm:$0xff]
    %v188 = vld [vmem:[#allocation7 + $0x20] sm:$0xff]
    %v189 = vld [vmem:[#allocation7 + $0x28] sm:$0xff]
    %v190 = vld [vmem:[#allocation7 + $0x30] sm:$0xff]
    %v191 = vld [vmem:[#allocation7 + $0x38] sm:$0xff]
    %v192 = vld [vmem:[#allocation7 + $0x40] sm:$0xff]
    %v193 = vld [vmem:[#allocation7 + $0x48] sm:$0xff]
    %v194 = vld [vmem:[#allocation7 + $0x50] sm:$0xff]
    %v195 = vld [vmem:[#allocation7 + $0x58] sm:$0xff]
    %v196 = vld [vmem:[#allocation7 + $0x60] sm:$0xff]
    %v197 = vld [vmem:[#allocation7 + $0x68] sm:$0xff]
    %v198 = vld [vmem:[#allocation7 + $0x70] sm:$0xff]
    %v199 = vld [vmem:[#allocation7 + $0x78] sm:$0xff]
    %v200 = vld [vmem:[%s4] sm:$0x1]
    %v202 = vlaneseq
    %v203 = vshrl.u32 %v202, 7
    %v204 = vsub.s32 0, %v203
    %v205 = vrot.slane %v200, %v204
    %207 = vmatprep.subr.mxu0 0.0
    %208 = vmatpush1.msra.mxu0 %v184
    %209 = vmatprep.subr.mxu0 0.0
    %210 = vmatpush1.msra.mxu0 %v185
    %211 = vmatprep.subr.mxu0 0.0
    %212 = vmatpush1.msra.mxu0 %v186
    %213 = vmatprep.subr.mxu0 0.0
    %214 = vmatpush1.msra.mxu0 %v187
    %215 = vmatprep.subr.mxu0 0.0
    %216 = vmatpush1.msra.mxu0 %v188
    %217 = vmatprep.subr.mxu0 0.0
    %218 = vmatpush1.msra.mxu0 %v189
    %219 = vmatprep.subr.mxu0 0.0
    %220 = vmatpush1.msra.mxu0 %v190
    %221 = vmatprep.subr.mxu0 0.0
    %222 = vmatpush1.msra.mxu0 %v191
    %223 = vmatprep.subr.mxu0 0.0
    %224 = vmatpush1.msra.mxu0 %v192
    %225 = vmatprep.subr.mxu0 0.0
    %226 = vmatpush1.msra.mxu0 %v193
    %227 = vmatprep.subr.mxu0 0.0
    %228 = vmatpush1.msra.mxu0 %v194
    %229 = vmatprep.subr.mxu0 0.0
    %230 = vmatpush1.msra.mxu0 %v195
    %231 = vmatprep.subr.mxu0 0.0
    %232 = vmatpush1.msra.mxu0 %v196
    %233 = vmatprep.subr.mxu0 0.0
    %234 = vmatpush1.msra.mxu0 %v197
    %235 = vmatprep.subr.mxu0 0.0
    %236 = vmatpush1.msra.mxu0 %v198
    %237 = vmatprep.subr.mxu0 0.0
    %238 = vmatpush1.msra.mxu0 %v199
    %239 = vmatprep.subr.mxu0 0.0
    %240 = vmatpush1.msra.mxu0 0.0
    %241 = vmatprep.subr.mxu0 0.0
    %242 = vmatpush1.msra.mxu0 0.0
    %243 = vmatprep.subr.mxu0 0.0
    %244 = vmatpush1.msra.mxu0 0.0
    %245 = vmatprep.subr.mxu0 0.0
    %246 = vmatpush1.msra.mxu0 0.0
    %247 = vmatprep.subr.mxu0 0.0
    %248 = vmatpush1.msra.mxu0 0.0
    %249 = vmatprep.subr.mxu0 0.0
    %250 = vmatpush1.msra.mxu0 0.0
    %251 = vmatprep.subr.mxu0 0.0
    %252 = vmatpush1.msra.mxu0 0.0
    %253 = vmatprep.subr.mxu0 0.0
    %254 = vmatpush1.msra.mxu0 0.0
    %255 = vmatprep.subr.mxu0 0.0
    %256 = vmatpush1.msra.mxu0 0.0
    %257 = vmatprep.subr.mxu0 0.0
    %258 = vmatpush1.msra.mxu0 0.0
    %259 = vmatprep.subr.mxu0 0.0
    %260 = vmatpush1.msra.mxu0 0.0
    %261 = vmatprep.subr.mxu0 0.0
    %262 = vmatpush1.msra.mxu0 0.0
    %263 = vmatprep.subr.mxu0 0.0
    %264 = vmatpush1.msra.mxu0 0.0
    %265 = vmatprep.subr.mxu0 0.0
    %266 = vmatpush1.msra.mxu0 0.0
    %267 = vmatprep.subr.mxu0 0.0
    %268 = vmatpush1.msra.mxu0 0.0
    %269 = vmatprep.subr.mxu0 0.0
    %270 = vmatpush1.msra.mxu0 0.0
    %271 = vmatprep.mubr.f32.mxu0 0.0
    %272 = vmatmul.mubr.f32.gmra.mrb[0].mxu0 %v182
    %v273 = vpop.f32.mrb[0].mxu0
    %v274 = vadd.f32 %v205, %v273
    %v275 = vpop.f32.mrb[0].mxu0
    %276 = vmatprep.mubr.f32.mxu0 0.0
    %277 = vmatmul.mubr.f32.gmra.mrb[0].mxu0 %v183
    %v278 = vpop.f32.mrb[0].mxu0
    %v279 = vadd.f32 %v205, %v278
    %v280 = vpop.f32.mrb[0].mxu0
    %281 = vdwg.mxu0
    %v282 = vmax.f32 %v274, 0.0
    %v283 = vmax.f32 %v279, 0.0
    %v284 = vld [vmem:[#allocation8] sm:$0xff]
    %v285 = vld [vmem:[#allocation8 + $0x8] sm:$0xff]
    %v286 = vld [vmem:[#allocation8 + $0x10] sm:$0xff]
    %v287 = vld [vmem:[#allocation8 + $0x18] sm:$0xff]
    %v288 = vld [vmem:[#allocation8 + $0x20] sm:$0xff]
    %v289 = vld [vmem:[#allocation8 + $0x28] sm:$0xff]
    %v290 = vld [vmem:[#allocation8 + $0x30] sm:$0xff]
    %v291 = vld [vmem:[#allocation8 + $0x38] sm:$0xff]
    %v292 = vld [vmem:[#allocation8 + $0x40] sm:$0xff]
    %v293 = vld [vmem:[#allocation8 + $0x48] sm:$0xff]
    %v294 = vld [vmem:[#allocation8 + $0x50] sm:$0xff]
    %v295 = vld [vmem:[#allocation8 + $0x58] sm:$0xff]
    %v296 = vld [vmem:[#allocation8 + $0x60] sm:$0xff]
    %v297 = vld [vmem:[#allocation8 + $0x68] sm:$0xff]
    %v298 = vld [vmem:[#allocation8 + $0x70] sm:$0xff]
    %v299 = vld [vmem:[#allocation8 + $0x78] sm:$0xff]
    %v300 = vld [vmem:[%s6] sm:$0x1]
    %v302 = vlaneseq
    %v303 = vshrl.u32 %v302, 7
    %v304 = vsub.s32 0, %v303
    %v305 = vrot.slane %v300, %v304
    %307 = vmatprep.subr.mxu0 0.0
    %308 = vmatpush1.msra.mxu0 %v284
    %309 = vmatprep.subr.mxu0 0.0
    %310 = vmatpush1.msra.mxu0 %v285
    %311 = vmatprep.subr.mxu0 0.0
    %312 = vmatpush1.msra.mxu0 %v286
    %313 = vmatprep.subr.mxu0 0.0
    %314 = vmatpush1.msra.mxu0 %v287
    %315 = vmatprep.subr.mxu0 0.0
    %316 = vmatpush1.msra.mxu0 %v288
    %317 = vmatprep.subr.mxu0 0.0
    %318 = vmatpush1.msra.mxu0 %v289
    %319 = vmatprep.subr.mxu0 0.0
    %320 = vmatpush1.msra.mxu0 %v290
    %321 = vmatprep.subr.mxu0 0.0
    %322 = vmatpush1.msra.mxu0 %v291
    %323 = vmatprep.subr.mxu0 0.0
    %324 = vmatpush1.msra.mxu0 %v292
    %325 = vmatprep.subr.mxu0 0.0
    %326 = vmatpush1.msra.mxu0 %v293
    %327 = vmatprep.subr.mxu0 0.0
    %328 = vmatpush1.msra.mxu0 %v294
    %329 = vmatprep.subr.mxu0 0.0
    %330 = vmatpush1.msra.mxu0 %v295
    %331 = vmatprep.subr.mxu0 0.0
    %332 = vmatpush1.msra.mxu0 %v296
    %333 = vmatprep.subr.mxu0 0.0
    %334 = vmatpush1.msra.mxu0 %v297
    %335 = vmatprep.subr.mxu0 0.0
    %336 = vmatpush1.msra.mxu0 %v298
    %337 = vmatprep.subr.mxu0 0.0
    %338 = vmatpush1.msra.mxu0 %v299
    %339 = vmatprep.subr.mxu0 0.0
    %340 = vmatpush1.msra.mxu0 0.0
    %341 = vmatprep.subr.mxu0 0.0
    %342 = vmatpush1.msra.mxu0 0.0
    %343 = vmatprep.subr.mxu0 0.0
    %344 = vmatpush1.msra.mxu0 0.0
    %345 = vmatprep.subr.mxu0 0.0
    %346 = vmatpush1.msra.mxu0 0.0
    %347 = vmatprep.subr.mxu0 0.0
    %348 = vmatpush1.msra.mxu0 0.0
    %349 = vmatprep.subr.mxu0 0.0
    %350 = vmatpush1.msra.mxu0 0.0
    %351 = vmatprep.subr.mxu0 0.0
    %352 = vmatpush1.msra.mxu0 0.0
    %353 = vmatprep.subr.mxu0 0.0
    %354 = vmatpush1.msra.mxu0 0.0
    %355 = vmatprep.subr.mxu0 0.0
    %356 = vmatpush1.msra.mxu0 0.0
    %357 = vmatprep.subr.mxu0 0.0
    %358 = vmatpush1.msra.mxu0 0.0
    %359 = vmatprep.subr.mxu0 0.0
    %360 = vmatpush1.msra.mxu0 0.0
    %361 = vmatprep.subr.mxu0 0.0
    %362 = vmatpush1.msra.mxu0 0.0
    %363 = vmatprep.subr.mxu0 0.0
    %364 = vmatpush1.msra.mxu0 0.0
    %365 = vmatprep.subr.mxu0 0.0
    %366 = vmatpush1.msra.mxu0 0.0
    %367 = vmatprep.subr.mxu0 0.0
    %368 = vmatpush1.msra.mxu0 0.0
    %369 = vmatprep.subr.mxu0 0.0
    %370 = vmatpush1.msra.mxu0 0.0
    %371 = vmatprep.mubr.f32.mxu0 0.0
    %372 = vmatmul.mubr.f32.gmra.mrb[0].mxu0 %v282
    %v373 = vpop.f32.mrb[0].mxu0
    %v374 = vadd.f32 %v305, %v373
    %v375 = vpop.f32.mrb[0].mxu0
    %376 = vmatprep.mubr.f32.mxu0 0.0
    %377 = vmatmul.mubr.f32.gmra.mrb[0].mxu0 %v283
    %v378 = vpop.f32.mrb[0].mxu0
    %v379 = vadd.f32 %v305, %v378
    %v380 = vpop.f32.mrb[0].mxu0
    %381 = vdwg.mxu0
    %382 = vst [vmem:[#allocation10] sm:$0xff] %v374
    %383 = vst [vmem:[#allocation10 + $0x8] sm:$0xff] %v379
    // Predicated region
    $region46: #{tpu_custom_call.1} parent=1 // pred_check
      _
    $region47: #{tpu_custom_call.1} parent=1 // pred_check_branch
      %385 = sbr.rel (0) target = $region49
    $region48: #{tpu_custom_call.1} parent=1 // pred_region
      %s387 = ssub.s32 256, 256
      %388 = vsyncadd [#allocation4], %s387
      %s389 = sshll.u32 [#allocation10], 4
      %s390 = int_to_ptr.vmem [resolvable:$true] %s389
      %395 = dma.vmem_to_hbm [thread:$0]  %s390, 256, %s7, [#allocation4], 128, 128, 8
    $region49: #{tpu_custom_call.1} parent=1 // pred_fallthru
      _
    // Predicated region
    $region50: #{tpu_custom_call.1} parent=1 // pred_check
      _
    $region51: #{tpu_custom_call.1} parent=1 // pred_check_branch
      %397 = sbr.rel (0) target = $region53
    $region52: #{tpu_custom_call.1} parent=1 // pred_region
      %398 = dma.done [#allocation4], 256
    $region53: #{tpu_custom_call.1} parent=1 // pred_fallthru
      _
    %399 = vsyncpa [#allocation3], 1
    %400 = vsyncpa [#allocation6], 1
    %401 = vsyncpa [#allocation9], 1
    %402 = vsyncpa [#allocation4], 1

</llo_original>
